<compile_context>
chip_gen: v6e
topology: v6e:2x2x1
jax: 0.10.0
libtpu: 0.0.40
codegen_flags: <defaults>
</compile_context>

<pallas_src>
from collections import OrderedDict, namedtuple
import functools

import jax
import jax.numpy as jnp
from jax import lax
from jax.experimental import pallas as pl
from jax.experimental.pallas import tpu as pltpu


def _round_up(x, m):
    return ((x + m - 1) // m) * m


def _pick_tile_hw(hw, cap=512):
    """Largest 'nice' spatial tile <= cap that divides H*W (multiple of 8)."""
    for cand in (512, 256, 128, 64, 32, 16, 8):
        if cand <= cap and hw % cand == 0:
            return cand
    return hw  # fall back to the full extent (still a legal full-dim block)


# ---------------------------------------------------------------------------
# Fused Pallas kernel: Conv3x3(as matmul) + bias + ReLU + GAP + FC head
# ---------------------------------------------------------------------------
def _fused_conv_gap_fc_kernel(patch_ref, wc_ref, bc_ref, wf_ref, bf_ref,
                              o_ref, acc_ref, *, inv_hw):
    """One grid step = one (batch, spatial-tile) pair.

    patch_ref: [tile_hw, K_pad]   bf16  im2col patches of this spatial tile
    wc_ref:    [K_pad, OC_pad]    bf16  conv weight (zero-padded rows/cols)
    bc_ref:    [1, OC_pad]        f32   conv bias   (zero in padded channels)
    wf_ref:    [OC_pad, NC_pad]   f32   FC weight   (zero-padded rows/cols)
    bf_ref:    [1, NC_pad]        f32   FC bias
    o_ref:     [1, NC_pad]        f32   per-batch logits (written in epilogue)
    acc_ref:   [1, OC_pad]        f32   VMEM accumulator of pooled conv sums
    """
    s = pl.program_id(1)

    @pl.when(s == 0)
    def _():
        acc_ref[...] = jnp.zeros_like(acc_ref)

    # MXU: bf16 x bf16 -> f32 accumulate; bias + ReLU on the VPU in f32.
    conv = jnp.dot(patch_ref[...], wc_ref[...],
                   preferred_element_type=jnp.float32)        # [tile_hw, OC_pad]
    conv = jnp.maximum(conv + bc_ref[...], 0.0)
    # Partial global-average-pool: sum this spatial tile into the accumulator.
    acc_ref[...] += jnp.sum(conv, axis=0, keepdims=True)       # [1, OC_pad]

    @pl.when(s == pl.num_programs(1) - 1)
    def _():
        pooled = acc_ref[...] * inv_hw                         # true 1/(H*W)
        logits = jnp.dot(pooled, wf_ref[...],
                         preferred_element_type=jnp.float32) + bf_ref[...]
        o_ref[...] = logits.astype(o_ref.dtype)


def fused_conv_gap_fc(patches, w_conv, b_conv, w_fc, b_fc, *, hw, tile_hw):
    """patches: [B, HW, K_pad] bf16 -> logits [B, 1, NC_pad] f32."""
    B, HW, k_pad = patches.shape
    _, oc_pad = w_conv.shape
    _, nc_pad = w_fc.shape
    assert HW % tile_hw == 0, (HW, tile_hw)
    n_s = HW // tile_hw

    kernel = functools.partial(_fused_conv_gap_fc_kernel, inv_hw=1.0 / float(hw))
    return pl.pallas_call(
        kernel,
        out_shape=jax.ShapeDtypeStruct((B, 1, nc_pad), jnp.float32),
        grid=(B, n_s),
        in_specs=[
            # patch tile: double-buffered DMA across the spatial grid axis
            pl.BlockSpec((None, tile_hw, k_pad), lambda b, s: (b, s, 0)),
            # weights / biases: constant block index -> stay resident in VMEM
            pl.BlockSpec((k_pad, oc_pad), lambda b, s: (0, 0)),
            pl.BlockSpec((1, oc_pad), lambda b, s: (0, 0)),
            pl.BlockSpec((oc_pad, nc_pad), lambda b, s: (0, 0)),
            pl.BlockSpec((1, nc_pad), lambda b, s: (0, 0)),
        ],
        out_specs=pl.BlockSpec((None, 1, nc_pad), lambda b, s: (b, 0, 0)),
        scratch_shapes=[pltpu.VMEM((1, oc_pad), jnp.float32)],
        compiler_params=pltpu.CompilerParams(
            # batch axis -> both TensorCores on v7x; HW reduction stays ordered
            dimension_semantics=("parallel", "arbitrary")),
    )(patches, w_conv, b_conv, w_fc, b_fc)


# ---------------------------------------------------------------------------
# Glue: build patches directly in (dh, dw, c) NHWC-patch order, bf16, K padded
# ---------------------------------------------------------------------------
def build_patches(im_nchw, k_pad, compute_dtype=jnp.bfloat16):
    """im: [B, C, H, W] -> patches [B, H*W, k_pad] (3x3, stride 1, 'same')."""
    B, C, H, W = im_nchw.shape
    x = jnp.transpose(im_nchw, (0, 2, 3, 1)).astype(compute_dtype)   # NHWC
    xp = jnp.pad(x, ((0, 0), (1, 1), (1, 1), (0, 0)))
    cols = [xp[:, dh:dh + H, dw:dw + W, :] for dh in range(3) for dw in range(3)]
    p = jnp.concatenate(cols, axis=-1)              # [B, H, W, 9*C], (dh,dw,c)
    p = p.reshape(B, H * W, 9 * C)
    if k_pad > 9 * C:
        p = jnp.pad(p, ((0, 0), (0, 0), (0, k_pad - 9 * C)))
    return p


# ---------------------------------------------------------------------------
# TRTModule-equivalent wrapper
# ---------------------------------------------------------------------------
Binding = namedtuple("Binding", ("name", "dtype", "shape"))


class PallasTRTModule:
    """Mimics TRTModule.forward semantics with a synthetic Pallas 'engine'."""

    def __init__(self, input_shape, num_classes=10, c_out=8, fp16=False,
                 seed=0, tile_hw=None):
        B, C, H, W = input_shape
        self.fp16 = fp16
        self.dynamic = False
        self.output_names = ["output0"]
        self.num_classes = num_classes
        self.hw = H * W

        K = 9 * C
        self.k_pad = _round_up(K, 128)
        self.oc_pad = _round_up(c_out, 128)
        self.nc_pad = _round_up(num_classes, 128)
        self.tile_hw = tile_hw if tile_hw is not None else _pick_tile_hw(self.hw)
        assert self.hw % self.tile_hw == 0, "spatial extent must tile evenly"

        key = jax.random.PRNGKey(seed)
        k0, k1, k2, k3 = jax.random.split(key, 4)
        # fp32 "engine weights" (PyTorch layouts), kept for the reference check
        w_conv = jax.random.normal(k0, (c_out, C, 3, 3), jnp.float32) * 0.1  # OIHW
        b_conv = jax.random.normal(k1, (c_out,), jnp.float32) * 0.1
        w_fc = jax.random.normal(k2, (c_out, num_classes), jnp.float32) * 0.1
        b_fc = jax.random.normal(k3, (num_classes,), jnp.float32) * 0.1
        self._w_conv, self._b_conv, self._w_fc, self._b_fc = w_conv, b_conv, w_fc, b_fc

        # Matmul layouts, lane-dense / 128-aligned, bf16 MXU operands.
        # Row order of the conv weight matches the patch order (dh, dw, c).
        w_mm = jnp.transpose(w_conv, (2, 3, 1, 0)).reshape(K, c_out)
        self.w_conv_mm = (jnp.zeros((self.k_pad, self.oc_pad), jnp.bfloat16)
                          .at[:K, :c_out].set(w_mm.astype(jnp.bfloat16)))
        self.b_conv_p = (jnp.zeros((1, self.oc_pad), jnp.float32)
                         .at[0, :c_out].set(b_conv))
        self.w_fc_p = (jnp.zeros((self.oc_pad, self.nc_pad), jnp.float32)
                       .at[:c_out, :num_classes].set(w_fc))
        self.b_fc_p = (jnp.zeros((1, self.nc_pad), jnp.float32)
                       .at[0, :num_classes].set(b_fc))

        self.bindings = OrderedDict(
            images=Binding("images", jnp.float16 if fp16 else jnp.float32,
                           tuple(input_shape)),
            output0=Binding("output0", jnp.float32, (B, num_classes)),
        )

    def forward(self, im):
        # fp16 cast, exactly as TRTModule does
        if self.fp16 and im.dtype != jnp.float16:
            im = im.astype(jnp.float16)
        s = self.bindings["images"].shape
        assert im.shape == s, (
            f"input size {im.shape} "
            f"{'>' if self.dynamic else 'not equal to'} max model size {s}"
        )

        # "execute_v2": fused synthetic engine in a single Pallas kernel.
        # Patches go straight to bf16 (no fp16 -> fp32 -> compute churn).
        patches = build_patches(im, self.k_pad, jnp.bfloat16)   # [B, HW, K_pad]
        logits_p = fused_conv_gap_fc(
            patches, self.w_conv_mm, self.b_conv_p, self.w_fc_p, self.b_fc_p,
            hw=self.hw, tile_hw=self.tile_hw)                    # [B, 1, NC_pad]
        logits = logits_p[:, 0, :self.num_classes]               # [B, NC]

        outputs = {"output0": logits}
        # return list of outputs sorted by output name (TRTModule semantics)
        return [outputs[n] for n in sorted(self.output_names)]

    __call__ = forward


# ---------------------------------------------------------------------------
# Reference (pure JAX, lax.conv path) for sanity check
# ---------------------------------------------------------------------------
def _reference(module, im):
    if module.fp16 and im.dtype != jnp.float16:
        im = im.astype(jnp.float16)
    # Match the kernel's bf16 MXU operand rounding; accumulate in fp32.
    x = im.astype(jnp.bfloat16).astype(jnp.float32)
    w = module._w_conv.astype(jnp.bfloat16).astype(jnp.float32)
    conv = lax.conv_general_dilated(
        x, w, window_strides=(1, 1), padding="SAME",
        dimension_numbers=("NCHW", "OIHW", "NCHW"),
        precision=lax.Precision.HIGHEST,
    ) + module._b_conv.reshape(1, -1, 1, 1)
    conv = jnp.maximum(conv, 0.0)
    pooled = conv.mean(axis=(2, 3))                              # [B, OC]
    return jnp.dot(pooled, module._w_fc,
                   precision=lax.Precision.HIGHEST) + module._b_fc


if __name__ == "__main__":
    B, C, H, W = 2, 4, 16, 16
    key = jax.random.PRNGKey(0)
    images = jax.random.normal(key, (B, C, H, W), jnp.float32)

    # tile_hw=64 -> 4 spatial reduction steps per batch, exercising the
    # pl.when init / accumulate / finalize path of the fused kernel.
    module = PallasTRTModule(input_shape=(B, C, H, W), num_classes=10,
                             c_out=8, fp16=False, tile_hw=64)

    outs = module(images)
    outs = [jax.block_until_ready(o) for o in outs]

    ref = _reference(module, images)
    assert outs[0].shape == (B, 10), outs[0].shape
    assert jnp.allclose(outs[0], ref, atol=5e-3, rtol=5e-3), "mismatch vs reference"

    print("KERNEL_OK")
</pallas_src>

<mosaic_0001>
module attributes {stable_mosaic.version = 11 : i64} {
  func.func @_fused_conv_gap_fc_kernel(%arg0: i32, %arg1: i32, %arg2: memref<1x64x128xbf16, #tpu.memory_space<vmem>>, %arg3: memref<128x128xbf16, #tpu.memory_space<vmem>>, %arg4: memref<1x128xf32, #tpu.memory_space<vmem>>, %arg5: memref<128x128xf32, #tpu.memory_space<vmem>>, %arg6: memref<1x128xf32, #tpu.memory_space<vmem>>, %arg7: memref<1x1x128xf32, #tpu.memory_space<vmem>>, %arg8: memref<1x128xf32, #tpu.memory_space<vmem>>) attributes {dimension_semantics = [#tpu.dimension_semantics<parallel>, #tpu.dimension_semantics<arbitrary>], iteration_bounds = array<i64: 2, 4>, scalar_prefetch = 0 : i64, scratch_operands = 1 : i64, tpu.core_type = #tpu.core_type<tc>, window_params = [{transform_indices = @transform_0, window_bounds = array<i64: 1, 64, 128>}, {pipeline_mode = #tpu.pipeline_mode<synchronous>, transform_indices = @transform_1, window_bounds = array<i64: 128, 128>}, {pipeline_mode = #tpu.pipeline_mode<synchronous>, transform_indices = @transform_2, window_bounds = array<i64: 1, 128>}, {pipeline_mode = #tpu.pipeline_mode<synchronous>, transform_indices = @transform_3, window_bounds = array<i64: 128, 128>}, {pipeline_mode = #tpu.pipeline_mode<synchronous>, transform_indices = @transform_4, window_bounds = array<i64: 1, 128>}, {transform_indices = @transform_5, window_bounds = array<i64: 1, 1, 128>}]} {
    %c0_i32 = arith.constant 0 : i32
    %0 = arith.cmpi eq, %arg1, %c0_i32 : i32
    %1 = arith.extui %0 : i1 to i32
    %c0_i32_0 = arith.constant 0 : i32
    %2 = arith.cmpi ne, %1, %c0_i32_0 : i32
    scf.if %2 {
      %cst_14 = arith.constant 0.000000e+00 : f32
      %20 = vector.broadcast %cst_14 : f32 to vector<1x128xf32>
      %c0_15 = arith.constant 0 : index
      %c0_16 = arith.constant 0 : index
      %21 = vector.load %arg8[%c0_15, %c0_16] : memref<1x128xf32, #tpu.memory_space<vmem>>, vector<1x128xf32>
      tpu.vector_store %arg8[%c0_15, %c0_16], %20 {strides = array<i32>} : memref<1x128xf32, #tpu.memory_space<vmem>>, vector<1x128xf32>,
    } else {
    }
    %c0 = arith.constant 0 : index
    %c0_1 = arith.constant 0 : index
    %c0_2 = arith.constant 0 : index
    %3 = vector.load %arg2[%c0, %c0_1, %c0_2] : memref<1x64x128xbf16, #tpu.memory_space<vmem>>, vector<1x64x128xbf16>
    %4 = vector.shape_cast %3 : vector<1x64x128xbf16> to vector<64x128xbf16>
    %c0_3 = arith.constant 0 : index
    %c0_4 = arith.constant 0 : index
    %5 = vector.load %arg3[%c0_3, %c0_4] : memref<128x128xbf16, #tpu.memory_space<vmem>>, vector<128x128xbf16>
    %cst = arith.constant dense<0.000000e+00> : vector<64x128xf32>
    %6 = tpu.matmul %4, %5, %cst {dimension_numbers = #tpu.dot_dimension_numbers<[1], [0], [0], [1], [0, 0, 1, 1], [], []>} : vector<64x128xbf16>, vector<128x128xbf16>, vector<64x128xf32> -> vector<64x128xf32>
    %c0_5 = arith.constant 0 : index
    %c0_6 = arith.constant 0 : index
    %7 = vector.load %arg4[%c0_5, %c0_6] : memref<1x128xf32, #tpu.memory_space<vmem>>, vector<1x128xf32>
    %8 = vector.broadcast %7 : vector<1x128xf32> to vector<64x128xf32>
    %9 = arith.addf %6, %8 : vector<64x128xf32>
    %cst_7 = arith.constant 0.000000e+00 : f32
    %10 = vector.broadcast %cst_7 : f32 to vector<64x128xf32>
    %11 = arith.maximumf %9, %10 : vector<64x128xf32>
    %c0_8 = arith.constant 0 : index
    %c0_9 = arith.constant 0 : index
    %12 = vector.load %arg8[%c0_8, %c0_9] : memref<1x128xf32, #tpu.memory_space<vmem>>, vector<1x128xf32>
    %cst_10 = arith.constant dense<0.000000e+00> : vector<128xf32>
    %13 = vector.multi_reduction <add>, %11, %cst_10 [0] : vector<64x128xf32> to vector<128xf32>
    %14 = vector.shape_cast %13 : vector<128xf32> to vector<1x128xf32>
    %15 = arith.addf %12, %14 : vector<1x128xf32>
    %c0_11 = arith.constant 0 : index
    %c0_12 = arith.constant 0 : index
    %16 = vector.load %arg8[%c0_11, %c0_12] : memref<1x128xf32, #tpu.memory_space<vmem>>, vector<1x128xf32>
    tpu.vector_store %arg8[%c0_11, %c0_12], %15 {strides = array<i32>} : memref<1x128xf32, #tpu.memory_space<vmem>>, vector<1x128xf32>,
    %c3_i32 = arith.constant 3 : i32
    %17 = arith.cmpi eq, %arg1, %c3_i32 : i32
    %18 = arith.extui %17 : i1 to i32
    %c0_i32_13 = arith.constant 0 : i32
    %19 = arith.cmpi ne, %18, %c0_i32_13 : i32
    scf.if %19 {
      %c0_14 = arith.constant 0 : index
      %c0_15 = arith.constant 0 : index
      %20 = vector.load %arg8[%c0_14, %c0_15] : memref<1x128xf32, #tpu.memory_space<vmem>>, vector<1x128xf32>
      %cst_16 = arith.constant 3.906250e-03 : f32
      %21 = vector.broadcast %cst_16 : f32 to vector<1x128xf32>
      %22 = arith.mulf %20, %21 : vector<1x128xf32>
      %c0_17 = arith.constant 0 : index
      %c0_18 = arith.constant 0 : index
      %23 = vector.load %arg5[%c0_17, %c0_18] : memref<128x128xf32, #tpu.memory_space<vmem>>, vector<128x128xf32>
      %cst_19 = arith.constant dense<0.000000e+00> : vector<1x128xf32>
      %24 = tpu.matmul %22, %23, %cst_19 {dimension_numbers = #tpu.dot_dimension_numbers<[1], [0], [0], [1], [0, 0, 1, 1], [], []>} : vector<1x128xf32>, vector<128x128xf32>, vector<1x128xf32> -> vector<1x128xf32>
      %c0_20 = arith.constant 0 : index
      %c0_21 = arith.constant 0 : index
      %25 = vector.load %arg6[%c0_20, %c0_21] : memref<1x128xf32, #tpu.memory_space<vmem>>, vector<1x128xf32>
      %26 = arith.addf %24, %25 : vector<1x128xf32>
      %c0_22 = arith.constant 0 : index
      %c0_23 = arith.constant 0 : index
      %c0_24 = arith.constant 0 : index
      %27 = vector.load %arg7[%c0_22, %c0_23, %c0_24] : memref<1x1x128xf32, #tpu.memory_space<vmem>>, vector<1x1x128xf32>
      %28 = vector.shape_cast %27 : vector<1x1x128xf32> to vector<1x128xf32>
      %29 = vector.shape_cast %26 : vector<1x128xf32> to vector<1x1x128xf32>
      tpu.vector_store %arg7[%c0_22, %c0_23, %c0_24], %29 {strides = array<i32>} : memref<1x1x128xf32, #tpu.memory_space<vmem>>, vector<1x1x128xf32>,
    } else {
    }
    return
  }
  func.func @transform_0(%arg0: i32, %arg1: i32) -> (i32, i32, i32) {
    %c0_i32 = arith.constant 0 : i32
    %c0_i32_0 = arith.constant 0 : i32
    return %arg0, %arg1, %c0_i32 : i32, i32, i32
  }
  func.func @transform_1(%arg0: i32, %arg1: i32) -> (i32, i32) {
    %c0_i32 = arith.constant 0 : i32
    %c0_i32_0 = arith.constant 0 : i32
    %c0_i32_1 = arith.constant 0 : i32
    return %c0_i32, %c0_i32_0 : i32, i32
  }
  func.func @transform_2(%arg0: i32, %arg1: i32) -> (i32, i32) {
    %c0_i32 = arith.constant 0 : i32
    %c0_i32_0 = arith.constant 0 : i32
    %c0_i32_1 = arith.constant 0 : i32
    return %c0_i32, %c0_i32_0 : i32, i32
  }
  func.func @transform_3(%arg0: i32, %arg1: i32) -> (i32, i32) {
    %c0_i32 = arith.constant 0 : i32
    %c0_i32_0 = arith.constant 0 : i32
    %c0_i32_1 = arith.constant 0 : i32
    return %c0_i32, %c0_i32_0 : i32, i32
  }
  func.func @transform_4(%arg0: i32, %arg1: i32) -> (i32, i32) {
    %c0_i32 = arith.constant 0 : i32
    %c0_i32_0 = arith.constant 0 : i32
    %c0_i32_1 = arith.constant 0 : i32
    return %c0_i32, %c0_i32_0 : i32, i32
  }
  func.func @transform_5(%arg0: i32, %arg1: i32) -> (i32, i32, i32) {
    %c0_i32 = arith.constant 0 : i32
    %c0_i32_0 = arith.constant 0 : i32
    %c0_i32_1 = arith.constant 0 : i32
    return %arg0, %c0_i32, %c0_i32_0 : i32, i32, i32
  }
}

</mosaic_0001>

<llo_original>
// kernel: tpu_custom_call.1
$region0: #{tpu_custom_call.1}
  #allocation0 [shape = 'u32[]', space=smem, size = 0x4, offset = 0x4, fixed_abs, tag = 'smem constant byte address 0x4 - core index']
  #allocation1 [shape = 'u32[144,128]{1,0:T(1,128)}', space=vmem, size = 0x12000, scoped, tag = 'internal scratch']
  #allocation2 [shape = 'f32[1,128]{1,0:T(1,128)}', space=vmem, size = 0x200, scoped, tag = 'scratch operand']
  %s0 = inlined_call_operand.hbm [shape: bf16[2,256,128], index: 0, kind: input, shape index: {}]
  %s1 = inlined_call_operand.hbm [shape: bf16[128,128], index: 1, kind: input, shape index: {}]
  %s2 = inlined_call_operand.vmem [shape: f32[1,128], index: 2, kind: input, shape index: {}]
  %s3 = inlined_call_operand.hbm [shape: f32[128,128], index: 3, kind: input, shape index: {}]
  %s4 = inlined_call_operand.vmem [shape: f32[1,128], index: 4, kind: input, shape index: {}]
  %s5 = inlined_call_operand.hbm [shape: f32[2,1,128], index: 5, kind: output, shape index: {}]
  %s6 = sld [smem:[#allocation0]]
  $region73: #{tpu_custom_call.1} parent=0
    _
  %s8 = ssub.s32 1, %s6
  %s9 = scalar_select 0, %s8, %s6
  $region1: #{tpu_custom_call.1} parent=0
    #allocation3 [shape = 'u8[32768]{0}', space=vmem, size = 0x8000, scoped, tag = 'input window, operand 0']
    #allocation4 [shape = 's32[2]{0}', space=sflag, size = 0x8, scoped, tag = 'scoped memory for tpu_custom_call.1']
    #allocation5 [shape = 's32[2]{0}', space=sflag, size = 0x8, scoped, tag = 'scoped memory for tpu_custom_call.1']
    #allocation6 [shape = 'u8[32768]{0}', space=vmem, size = 0x8000, scoped, tag = 'input window, operand 1, single buffered']
    #allocation7 [shape = 's32[1]{0}', space=sflag, size = 0x4, scoped, tag = 'scoped memory for tpu_custom_call.1']
    #allocation8 [shape = 'u8[65536]{0}', space=vmem, size = 0x10000, scoped, tag = 'input window, operand 3, single buffered']
    #allocation9 [shape = 'u8[1024]{0}', space=vmem, size = 0x400, scoped, tag = 'output window, operand 0']
    %10 = vsyncpa [#allocation4], 0
    %s11 = scalar_lea.sflag [#allocation4], 1
    %12 = vsyncpa %s11, 0
    %13 = vsyncpa [#allocation7], 0
    %14 = vsyncpa [#allocation5], 0
    %s15 = scalar_lea.sflag [#allocation5], 1
    %16 = vsyncpa %s15, 0
    loop: start=0, step=1, limit=10
    $region2: #{tpu_custom_call.1} parent=1 // loop_pre_header
      _
    $region3: #{tpu_custom_call.1} parent=1 // loop_header
      %s18 = sphi 0, %s22
      %p19 = scmp.ge.s32.totalorder %s18, 10
      %s25 = sphi 0, %s37
      %s26 = sphi 0, %s33
      %s27 = sphi 0, %s25
      %s28 = sphi 0, %s26
      %s29 = sphi 0, %s27
      %s30 = sphi 0, %s28
      %s42 = sphi 0, %s44
      %s45 = sphi 0, %s42
      %s46 = sphi 0, %s45
      %s62 = sphi 0, %s46
      %s66 = sphi 0, %s66
      %s68 = sphi 0, %s66
      %s69 = sphi 0, %s68
      %s83 = sphi 0, %s69
      %s87 = sphi 0, %s87
      %s89 = sphi 0, %s87
      %s90 = sphi 0, %s89
      %s104 = sphi 0, %s90
      %s108 = sphi 0, %s108
      %s110 = sphi 0, %s108
      %s111 = sphi 0, %s110
      %s125 = sphi 0, %s111
      %s129 = sphi 0, %s129
      %s131 = sphi 0, %s129
      %s132 = sphi 0, %s131
      %s146 = sphi 0, %s132
      %s152 = sphi 0, %s154
      %s155 = sphi 0, %s152
      %s156 = sphi 0, %s155
      %s172 = sphi 0, %s156
    $region4: #{tpu_custom_call.1} parent=1 // loop_header_branch
      %21 = sbr.rel (%p19) target = $region8
    $region5: #{tpu_custom_call.1} parent=1 // loop_body
      %s23 = ssub.s32 %s18, 1
      %s24 = ssub.s32 %s18, 2
      %s31 = sadd.s32 1, %s26
      %p32 = scmp.ge.s32.totalorder %s31, 4
      %s33 = scalar_select %p32, 0, %s31
      %s34 = sadd.s32 1, %s25
      %s35 = scalar_select %p32, %s34, %s25
      %p36 = scmp.ge.s32.totalorder %s35, 2
      %s37 = scalar_select %p36, 0, %s35
      %s38 = ssub.s32 %s25, %s37
      %s39 = ssub.s32 %s26, %s33
      %s40 = sor.u32 %s38, %s39
      %p41 = scmp.eq.s32.totalorder %s40, 0
      %s43 = sadd.s32 %s42, 1
      %s44 = scalar_select %p41, %s42, %s43
      %p47 = pneg %p41
      %p48 = scmp.eq.s32.totalorder %s18, 7
      %p49 = por %p47, %p48
      %p50 = scmp.ne.s32.totalorder %s42, %s45
      %p51 = scmp.eq.s32.totalorder %s18, 0
      %p52 = por %p50, %p51
      %p53 = scmp.ne.s32.totalorder %s42, %s45
      %p54 = scmp.eq.s32.totalorder %s23, 7
      %p55 = por %p53, %p54
      %p56 = scmp.ne.s32.totalorder %s45, %s46
      %p57 = scmp.eq.s32.totalorder %s23, 0
      %p58 = por %p56, %p57
      %p59 = scmp.ne.s32.totalorder %s45, %s46
      %p60 = scmp.eq.s32.totalorder %s24, 7
      %p61 = por %p59, %p60
      %p63 = scmp.ne.s32.totalorder %s46, %s62
      %p64 = scmp.eq.s32.totalorder %s24, 0
      %p65 = por %p63, %p64
      %s67 = sadd.s32 %s66, 1
      %p70 = scmp.eq.s32.totalorder %s18, 7
      %p71 = scmp.ne.s32.totalorder %s66, %s68
      %p72 = scmp.eq.s32.totalorder %s18, 0
      %p73 = por %p71, %p72
      %p74 = scmp.ne.s32.totalorder %s66, %s68
      %p75 = scmp.eq.s32.totalorder %s23, 7
      %p76 = por %p74, %p75
      %p77 = scmp.ne.s32.totalorder %s68, %s69
      %p78 = scmp.eq.s32.totalorder %s23, 0
      %p79 = por %p77, %p78
      %p80 = scmp.ne.s32.totalorder %s68, %s69
      %p81 = scmp.eq.s32.totalorder %s24, 7
      %p82 = por %p80, %p81
      %p84 = scmp.ne.s32.totalorder %s69, %s83
      %p85 = scmp.eq.s32.totalorder %s24, 0
      %p86 = por %p84, %p85
      %s88 = sadd.s32 %s87, 1
      %p91 = scmp.eq.s32.totalorder %s18, 7
      %p92 = scmp.ne.s32.totalorder %s87, %s89
      %p93 = scmp.eq.s32.totalorder %s18, 0
      %p94 = por %p92, %p93
      %p95 = scmp.ne.s32.totalorder %s87, %s89
      %p96 = scmp.eq.s32.totalorder %s23, 7
      %p97 = por %p95, %p96
      %p98 = scmp.ne.s32.totalorder %s89, %s90
      %p99 = scmp.eq.s32.totalorder %s23, 0
      %p100 = por %p98, %p99
      %p101 = scmp.ne.s32.totalorder %s89, %s90
      %p102 = scmp.eq.s32.totalorder %s24, 7
      %p103 = por %p101, %p102
      %p105 = scmp.ne.s32.totalorder %s90, %s104
      %p106 = scmp.eq.s32.totalorder %s24, 0
      %p107 = por %p105, %p106
      %s109 = sadd.s32 %s108, 1
      %p112 = scmp.eq.s32.totalorder %s18, 7
      %p113 = scmp.ne.s32.totalorder %s108, %s110
      %p114 = scmp.eq.s32.totalorder %s18, 0
      %p115 = por %p113, %p114
      %p116 = scmp.ne.s32.totalorder %s108, %s110
      %p117 = scmp.eq.s32.totalorder %s23, 7
      %p118 = por %p116, %p117
      %p119 = scmp.ne.s32.totalorder %s110, %s111
      %p120 = scmp.eq.s32.totalorder %s23, 0
      %p121 = por %p119, %p120
      %p122 = scmp.ne.s32.totalorder %s110, %s111
      %p123 = scmp.eq.s32.totalorder %s24, 7
      %p124 = por %p122, %p123
      %p126 = scmp.ne.s32.totalorder %s111, %s125
      %p127 = scmp.eq.s32.totalorder %s24, 0
      %p128 = por %p126, %p127
      %s130 = sadd.s32 %s129, 1
      %p133 = scmp.eq.s32.totalorder %s18, 7
      %p134 = scmp.ne.s32.totalorder %s129, %s131
      %p135 = scmp.eq.s32.totalorder %s18, 0
      %p136 = por %p134, %p135
      %p137 = scmp.ne.s32.totalorder %s129, %s131
      %p138 = scmp.eq.s32.totalorder %s23, 7
      %p139 = por %p137, %p138
      %p140 = scmp.ne.s32.totalorder %s131, %s132
      %p141 = scmp.eq.s32.totalorder %s23, 0
      %p142 = por %p140, %p141
      %p143 = scmp.ne.s32.totalorder %s131, %s132
      %p144 = scmp.eq.s32.totalorder %s24, 7
      %p145 = por %p143, %p144
      %p147 = scmp.ne.s32.totalorder %s132, %s146
      %p148 = scmp.eq.s32.totalorder %s24, 0
      %p149 = por %p147, %p148
      %s150 = ssub.s32 %s25, %s37
      %p151 = scmp.eq.s32.totalorder %s150, 0
      %s153 = sadd.s32 %s152, 1
      %s154 = scalar_select %p151, %s152, %s153
      %p157 = pneg %p151
      %p158 = scmp.eq.s32.totalorder %s18, 7
      %p159 = por %p157, %p158
      %p160 = scmp.ne.s32.totalorder %s152, %s155
      %p161 = scmp.eq.s32.totalorder %s18, 0
      %p162 = por %p160, %p161
      %p163 = scmp.ne.s32.totalorder %s152, %s155
      %p164 = scmp.eq.s32.totalorder %s23, 7
      %p165 = por %p163, %p164
      %p166 = scmp.ne.s32.totalorder %s155, %s156
      %p167 = scmp.eq.s32.totalorder %s23, 0
      %p168 = por %p166, %p167
      %p169 = scmp.ne.s32.totalorder %s155, %s156
      %p170 = scmp.eq.s32.totalorder %s24, 7
      %p171 = por %p169, %p170
      %p173 = scmp.ne.s32.totalorder %s156, %s172
      %p174 = scmp.eq.s32.totalorder %s24, 0
      %p175 = por %p173, %p174
      %p176 = scmp.le.s32.totalorder 1, %s18
      %p177 = scmp.lt.s32.totalorder %s18, 9
      %p178 = pnand %p176, %p177
      %p179 = pneg %p178
      // Predicated region
      $region9: #{tpu_custom_call.1} parent=5 // pred_check
        _
      $region10: #{tpu_custom_call.1} parent=5 // pred_check_branch
        %181 = sbr.rel (%p178) target = $region12
      $region11: #{tpu_custom_call.1} parent=5 // pred_region
        %s182 = ssub.s32 %s18, 1
        // Predicated region
        $region13: #{tpu_custom_call.1} parent=11 // pred_check
          %p183 = pneg %p79
        $region14: #{tpu_custom_call.1} parent=11 // pred_check_branch
          %185 = sbr.rel (%p183) target = $region16
        $region15: #{tpu_custom_call.1} parent=11 // pred_region
          %s187 = ssub.s32 1024, 1024
          %188 = vsyncadd [#allocation7], %s187
          %s189 = sshll.u32 [#allocation6], 4
          %s190 = int_to_ptr.vmem [resolvable:$true] %s189
          %195 = dma.hbm_to_vmem [thread:$0]  %s1, 1024, %s190, [#allocation7], 64, 64, 4
        $region16: #{tpu_custom_call.1} parent=11 // pred_fallthru
          _
        // Predicated region
        $region17: #{tpu_custom_call.1} parent=11 // pred_check
          %p196 = pneg %p100
        $region18: #{tpu_custom_call.1} parent=11 // pred_check_branch
          %198 = sbr.rel (%p196) target = $region20
        $region19: #{tpu_custom_call.1} parent=11 // pred_region
          _
        $region20: #{tpu_custom_call.1} parent=11 // pred_fallthru
          _
        // Predicated region
        $region21: #{tpu_custom_call.1} parent=11 // pred_check
          %p199 = pneg %p121
        $region22: #{tpu_custom_call.1} parent=11 // pred_check_branch
          %201 = sbr.rel (%p199) target = $region24
        $region23: #{tpu_custom_call.1} parent=11 // pred_region
          %s203 = ssub.s32 2048, 2048
          %204 = vsyncadd [#allocation7], %s203
          %s205 = sshll.u32 [#allocation8], 4
          %s206 = int_to_ptr.vmem [resolvable:$true] %s205
          %211 = dma.hbm_to_vmem [thread:$0]  %s3, 2048, %s206, [#allocation7], 128, 128, 8
        $region24: #{tpu_custom_call.1} parent=11 // pred_fallthru
          _
        // Predicated region
        $region25: #{tpu_custom_call.1} parent=11 // pred_check
          %p212 = pneg %p142
        $region26: #{tpu_custom_call.1} parent=11 // pred_check_branch
          %214 = sbr.rel (%p212) target = $region28
        $region27: #{tpu_custom_call.1} parent=11 // pred_region
          _
        $region28: #{tpu_custom_call.1} parent=11 // pred_fallthru
          _
      $region12: #{tpu_custom_call.1} parent=5 // pred_fallthru
        _
      %p215 = scmp.lt.s32.totalorder %s18, 8
      // Predicated region
      $region29: #{tpu_custom_call.1} parent=5 // pred_check
        %p216 = pneg %p215
      $region30: #{tpu_custom_call.1} parent=5 // pred_check_branch
        %218 = sbr.rel (%p216) target = $region32
      $region31: #{tpu_custom_call.1} parent=5 // pred_region
        // Predicated region
        $region33: #{tpu_custom_call.1} parent=31 // pred_check
          %p219 = pneg %p52
        $region34: #{tpu_custom_call.1} parent=31 // pred_check_branch
          %221 = sbr.rel (%p219) target = $region36
        $region35: #{tpu_custom_call.1} parent=31 // pred_region
          %s222 = sand.u32 %s42, 1
          %s223 = scalar_lea.sflag [#allocation4], %s222
          %s224 = sand.u32 %s42, 1
          %s225 = smul.addr %s224, 32
          %s226 = scalar_lea.vmem [#allocation3], %s225
          %s227 = smul.u32 8, %s26
          %s229 = ssub.s32 512, 512
          %230 = vsyncadd %s223, %s229
          %s231 = smul.addr %s25, 32
          %s232 = sadd.s32 %s227, %s231
          %s233 = smul.addr %s232, 64
          %s234 = scalar_lea.hbm %s0, %s233
          %s235 = sshll.u32 %s226, 4
          %s236 = int_to_ptr.vmem [resolvable:$true] %s235
          %241 = dma.hbm_to_vmem [thread:$0]  %s234, 512, %s236, %s223, 64, 64, 4
        $region36: #{tpu_custom_call.1} parent=31 // pred_fallthru
          _
      $region32: #{tpu_custom_call.1} parent=5 // pred_fallthru
        _
      %p242 = scmp.le.s32.totalorder 1, %s18
      %p243 = scmp.lt.s32.totalorder %s18, 9
      %p244 = pnand %p242, %p243
      %p245 = pneg %p244
      // Predicated region
      $region37: #{tpu_custom_call.1} parent=5 // pred_check
        _
      $region38: #{tpu_custom_call.1} parent=5 // pred_check_branch
        %247 = sbr.rel (%p244) target = $region40
      $region39: #{tpu_custom_call.1} parent=5 // pred_region
        %s248 = ssub.s32 %s18, 1
        %s249 = sand.u32 %s45, 1
        %s250 = scalar_lea.sflag [#allocation4], %s249
        %s251 = sand.u32 %s45, 1
        %s252 = smul.addr %s251, 32
        %s253 = scalar_lea.vmem [#allocation3], %s252
        // Predicated region
        $region41: #{tpu_custom_call.1} parent=39 // pred_check
          %p254 = pneg %p58
        $region42: #{tpu_custom_call.1} parent=39 // pred_check_branch
          %256 = sbr.rel (%p254) target = $region44
        $region43: #{tpu_custom_call.1} parent=39 // pred_region
          %257 = dma.done %s250, 512
        $region44: #{tpu_custom_call.1} parent=39 // pred_fallthru
          _
        // Predicated region
        $region45: #{tpu_custom_call.1} parent=39 // pred_check
          %p258 = pneg %p79
        $region46: #{tpu_custom_call.1} parent=39 // pred_check_branch
          %260 = sbr.rel (%p258) target = $region48
        $region47: #{tpu_custom_call.1} parent=39 // pred_region
          %261 = dma.done [#allocation7], 1024
        $region48: #{tpu_custom_call.1} parent=39 // pred_fallthru
          _
        // Predicated region
        $region49: #{tpu_custom_call.1} parent=39 // pred_check
          %p262 = pneg %p121
        $region50: #{tpu_custom_call.1} parent=39 // pred_check_branch
          %264 = sbr.rel (%p262) target = $region52
        $region51: #{tpu_custom_call.1} parent=39 // pred_region
          %265 = dma.done [#allocation7], 2048
        $region52: #{tpu_custom_call.1} parent=39 // pred_fallthru
          _
        %s266 = sand.u32 %s45, 1
        %s267 = scalar_lea.sflag [#allocation4], %s266
        %s268 = sand.u32 %s45, 1
        %s269 = smul.addr %s268, 32
        %s270 = scalar_lea.vmem [#allocation3], %s269
        %p271 = pneg %p58
        %p272 = pneg %p55
        %p273 = pneg %p79
        %p274 = pneg %p76
        %p275 = pneg %p100
        %p276 = pneg %p97
        %p277 = pneg %p121
        %p278 = pneg %p118
        %p279 = pneg %p142
        %p280 = pneg %p139
        %p281 = pneg %p168
        %p282 = pneg %p165
        %s283 = sand.u32 %s155, 1
        %s284 = scalar_lea.sflag [#allocation5], %s283
        %s285 = sand.u32 %s155, 1
        %s286 = scalar_lea.vmem [#allocation9], %s285
        %s287 = smul.u32 8, %s28
        %p289 = scmp.eq.s32.totalorder %s28, 0
        // Predicated region
        $region53: #{tpu_custom_call.1} parent=39 // pred_check
          %p290 = pneg %p289
        $region54: #{tpu_custom_call.1} parent=39 // pred_check_branch
          %292 = sbr.rel (%p290) target = $region56
        $region55: #{tpu_custom_call.1} parent=39 // pred_region
          %293 = vst [vmem:[#allocation2] sm:$0x1] 0.0
        $region56: #{tpu_custom_call.1} parent=39 // pred_fallthru
          _
        %v294 = vld [vmem:[%s253] sm:$0xf]
        %v295 = vld [vmem:[%s253 + $0x4] sm:$0xf]
        %v296 = vld [vmem:[%s253 + $0x8] sm:$0xf]
        %v297 = vld [vmem:[%s253 + $0xc] sm:$0xf]
        %v298 = vld [vmem:[%s253 + $0x10] sm:$0xf]
        %v299 = vld [vmem:[%s253 + $0x14] sm:$0xf]
        %v300 = vld [vmem:[%s253 + $0x18] sm:$0xf]
        %v301 = vld [vmem:[%s253 + $0x1c] sm:$0xf]
        %v302 = vld [vmem:[#allocation6] sm:$0xf]
        %v303 = vld [vmem:[#allocation6 + $0x4] sm:$0xf]
        %v304 = vld [vmem:[#allocation6 + $0x8] sm:$0xf]
        %v305 = vld [vmem:[#allocation6 + $0xc] sm:$0xf]
        %v306 = vld [vmem:[#allocation6 + $0x10] sm:$0xf]
        %v307 = vld [vmem:[#allocation6 + $0x14] sm:$0xf]
        %v308 = vld [vmem:[#allocation6 + $0x18] sm:$0xf]
        %v309 = vld [vmem:[#allocation6 + $0x1c] sm:$0xf]
        %v310 = vld [vmem:[#allocation6 + $0x20] sm:$0xf]
        %v311 = vld [vmem:[#allocation6 + $0x24] sm:$0xf]
        %v312 = vld [vmem:[#allocation6 + $0x28] sm:$0xf]
        %v313 = vld [vmem:[#allocation6 + $0x2c] sm:$0xf]
        %v314 = vld [vmem:[#allocation6 + $0x30] sm:$0xf]
        %v315 = vld [vmem:[#allocation6 + $0x34] sm:$0xf]
        %v316 = vld [vmem:[#allocation6 + $0x38] sm:$0xf]
        %v317 = vld [vmem:[#allocation6 + $0x3c] sm:$0xf]
        %v318 = vld [vmem:[%s2] sm:$0x1]
        %v320 = vlaneseq
        %v321 = vshrl.u32 %v320, 7
        %v322 = vsub.s32 0, %v321
        %v323 = vrot.slane %v318, %v322
        %v333 = vunpack.c.l.b16 %v294
        %v334 = vunpack.c.l.b16 %v295
        %v335 = vunpack.c.l.b16 %v296
        %v336 = vunpack.c.l.b16 %v297
        %v337 = vunpack.c.l.b16 %v298
        %v338 = vunpack.c.l.b16 %v299
        %v339 = vunpack.c.l.b16 %v300
        %v340 = vunpack.c.l.b16 %v301
        %v341 = vpack.c.b16 %v334, %v333
        %v342 = vpack.c.b16 %v336, %v335
        %v343 = vpack.c.b16 %v338, %v337
        %v344 = vpack.c.b16 %v340, %v339
        %v365 = vunpack.c.l.b16 %v302
        %v366 = vunpack.c.l.b16 %v303
        %v367 = vunpack.c.l.b16 %v304
        %v368 = vunpack.c.l.b16 %v305
        %v369 = vunpack.c.l.b16 %v306
        %v370 = vunpack.c.l.b16 %v307
        %v371 = vunpack.c.l.b16 %v308
        %v372 = vunpack.c.l.b16 %v309
        %v373 = vunpack.c.l.b16 %v310
        %v374 = vunpack.c.l.b16 %v311
        %v375 = vunpack.c.l.b16 %v312
        %v376 = vunpack.c.l.b16 %v313
        %v377 = vunpack.c.l.b16 %v314
        %v378 = vunpack.c.l.b16 %v315
        %v379 = vunpack.c.l.b16 %v316
        %v380 = vunpack.c.l.b16 %v317
        %v381 = vpack.c.b16 %v366, %v365
        %v382 = vpack.c.b16 %v368, %v367
        %v383 = vpack.c.b16 %v370, %v369
        %v384 = vpack.c.b16 %v372, %v371
        %v385 = vpack.c.b16 %v374, %v373
        %v386 = vpack.c.b16 %v376, %v375
        %v387 = vpack.c.b16 %v378, %v377
        %v388 = vpack.c.b16 %v380, %v379
        %397 = vmatprep.subr.bf16.mxu0 0
        %398 = vmatpush1.bf16.msra.mxu0 %v388
        %399 = vmatprep.subr.bf16.mxu0 0
        %400 = vmatpush1.bf16.msra.mxu0 %v387
        %401 = vmatprep.subr.bf16.mxu0 0
        %402 = vmatpush1.bf16.msra.mxu0 %v386
        %403 = vmatprep.subr.bf16.mxu0 0
        %404 = vmatpush1.bf16.msra.mxu0 %v385
        %405 = vmatprep.subr.bf16.mxu0 0
        %406 = vmatpush1.bf16.msra.mxu0 %v384
        %407 = vmatprep.subr.bf16.mxu0 0
        %408 = vmatpush1.bf16.msra.mxu0 %v383
        %409 = vmatprep.subr.bf16.mxu0 0
        %410 = vmatpush1.bf16.msra.mxu0 %v382
        %411 = vmatprep.subr.bf16.mxu0 0
        %412 = vmatpush1.bf16.msra.mxu0 %v381
        %413 = vmatprep.subr.bf16.mxu0 0
        %414 = vmatpush2.bf16.msra.mxu0 0
        %415 = vmatprep.subr.bf16.mxu0 0
        %416 = vmatpush2.bf16.msra.mxu0 0
        %417 = vmatprep.subr.bf16.mxu0 0
        %418 = vmatpush2.bf16.msra.mxu0 0
        %419 = vmatprep.subr.bf16.mxu0 0
        %420 = vmatpush2.bf16.msra.mxu0 0
        %421 = vmatprep.subr.bf16.mxu0 0
        %422 = vmatpush2.bf16.msra.mxu0 0
        %423 = vmatprep.subr.bf16.mxu0 0
        %424 = vmatpush2.bf16.msra.mxu0 0
        %425 = vmatprep.subr.bf16.mxu0 0
        %426 = vmatpush2.bf16.msra.mxu0 0
        %427 = vmatprep.subr.bf16.mxu0 0
        %428 = vmatpush2.bf16.msra.mxu0 0
        %429 = vmatprep.mubr.bf16.mxu0 0
        %430 = vmatmul.mubr.bf16.gmra.mxu0 %v341
        %v431 = vpop.f32.mrf.mxu0
        %v432 = vadd.f32 %v323, %v431
        %v433 = vpop.f32.mrf.mxu0
        %v434 = vpop.f32.mrf.mxu0
        %v435 = vadd.f32 %v323, %v434
        %v436 = vpop.f32.mrf.mxu0
        %437 = vmatprep.mubr.bf16.mxu0 0
        %438 = vmatmul.mubr.bf16.gmra.mxu0 %v342
        %v439 = vpop.f32.mrf.mxu0
        %v440 = vadd.f32 %v323, %v439
        %v441 = vpop.f32.mrf.mxu0
        %v442 = vpop.f32.mrf.mxu0
        %v443 = vadd.f32 %v323, %v442
        %v444 = vpop.f32.mrf.mxu0
        %445 = vmatprep.mubr.bf16.mxu0 0
        %446 = vmatmul.mubr.bf16.gmra.mxu0 %v343
        %v447 = vpop.f32.mrf.mxu0
        %v448 = vadd.f32 %v323, %v447
        %v449 = vpop.f32.mrf.mxu0
        %v450 = vpop.f32.mrf.mxu0
        %v451 = vadd.f32 %v323, %v450
        %v452 = vpop.f32.mrf.mxu0
        %453 = vmatprep.mubr.bf16.mxu0 0
        %454 = vmatmul.mubr.bf16.gmra.mxu0 %v344
        %v455 = vpop.f32.mrf.mxu0
        %v456 = vadd.f32 %v323, %v455
        %v457 = vpop.f32.mrf.mxu0
        %v458 = vpop.f32.mrf.mxu0
        %v459 = vadd.f32 %v323, %v458
        %v460 = vpop.f32.mrf.mxu0
        %461 = vdwg.mxu0
        %v462 = vmax.f32 %v432, 0.0
        %v463 = vmax.f32 %v435, 0.0
        %v464 = vmax.f32 %v440, 0.0
        %v465 = vmax.f32 %v443, 0.0
        %v466 = vmax.f32 %v448, 0.0
        %v467 = vmax.f32 %v451, 0.0
        %v468 = vmax.f32 %v456, 0.0
        %v469 = vmax.f32 %v459, 0.0
        %v470 = vld [vmem:[#allocation2] sm:$0x1]
        %v471 = vadd.f32 %v462, %v463
        %v472 = vadd.f32 %v471, %v464
        %v473 = vadd.f32 %v472, %v465
        %v474 = vadd.f32 %v473, %v466
        %v475 = vadd.f32 %v474, %v467
        %v476 = vadd.f32 %v475, %v468
        %v477 = vadd.f32 %v476, %v469
        %v478 = vrot.slane %v477, 4
        %v479 = vadd.f32 %v477, %v478
        %v480 = vrot.slane %v479, 2
        %v481 = vadd.f32 %v479, %v480
        %v482 = vrot.slane %v481, 1
        %v483 = vadd.f32 %v481, %v482
        %v484 = vadd.f32 %v470, %v483
        %485 = vst [vmem:[#allocation2] sm:$0x1] %v484
        %p486 = scmp.eq.s32.totalorder %s28, 3
        // Predicated region
        $region57: #{tpu_custom_call.1} parent=39 // pred_check
          %p487 = pneg %p486
        $region58: #{tpu_custom_call.1} parent=39 // pred_check_branch
          %489 = sbr.rel (%p487) target = $region60
        $region59: #{tpu_custom_call.1} parent=39 // pred_region
          %v490 = vld [vmem:[#allocation2] sm:$0x1]
          %v491 = vmul.f32 %v490, 0.00390625
          %v492 = vld [vmem:[#allocation8] sm:$0xff]
          %v493 = vld [vmem:[#allocation8 + $0x8] sm:$0xff]
          %v494 = vld [vmem:[#allocation8 + $0x10] sm:$0xff]
          %v495 = vld [vmem:[#allocation8 + $0x18] sm:$0xff]
          %v496 = vld [vmem:[#allocation8 + $0x20] sm:$0xff]
          %v497 = vld [vmem:[#allocation8 + $0x28] sm:$0xff]
          %v498 = vld [vmem:[#allocation8 + $0x30] sm:$0xff]
          %v499 = vld [vmem:[#allocation8 + $0x38] sm:$0xff]
          %v500 = vld [vmem:[#allocation8 + $0x40] sm:$0xff]
          %v501 = vld [vmem:[#allocation8 + $0x48] sm:$0xff]
          %v502 = vld [vmem:[#allocation8 + $0x50] sm:$0xff]
          %v503 = vld [vmem:[#allocation8 + $0x58] sm:$0xff]
          %v504 = vld [vmem:[#allocation8 + $0x60] sm:$0xff]
          %v505 = vld [vmem:[#allocation8 + $0x68] sm:$0xff]
          %v506 = vld [vmem:[#allocation8 + $0x70] sm:$0xff]
          %v507 = vld [vmem:[#allocation8 + $0x78] sm:$0xff]
          %v508 = vld [vmem:[%s4] sm:$0x1]
          %509 = vmatprep.subr.mxu0 0.0
          %510 = vmatpush1.msra.mxu0 %v507
          %511 = vmatprep.subr.mxu0 0.0
          %512 = vmatpush1.msra.mxu0 %v506
          %513 = vmatprep.subr.mxu0 0.0
          %514 = vmatpush1.msra.mxu0 %v505
          %515 = vmatprep.subr.mxu0 0.0
          %516 = vmatpush1.msra.mxu0 %v504
          %517 = vmatprep.subr.mxu0 0.0
          %518 = vmatpush1.msra.mxu0 %v503
          %519 = vmatprep.subr.mxu0 0.0
          %520 = vmatpush1.msra.mxu0 %v502
          %521 = vmatprep.subr.mxu0 0.0
          %522 = vmatpush1.msra.mxu0 %v501
          %523 = vmatprep.subr.mxu0 0.0
          %524 = vmatpush1.msra.mxu0 %v500
          %525 = vmatprep.subr.mxu0 0.0
          %526 = vmatpush1.msra.mxu0 %v499
          %527 = vmatprep.subr.mxu0 0.0
          %528 = vmatpush1.msra.mxu0 %v498
          %529 = vmatprep.subr.mxu0 0.0
          %530 = vmatpush1.msra.mxu0 %v497
          %531 = vmatprep.subr.mxu0 0.0
          %532 = vmatpush1.msra.mxu0 %v496
          %533 = vmatprep.subr.mxu0 0.0
          %534 = vmatpush1.msra.mxu0 %v495
          %535 = vmatprep.subr.mxu0 0.0
          %536 = vmatpush1.msra.mxu0 %v494
          %537 = vmatprep.subr.mxu0 0.0
          %538 = vmatpush1.msra.mxu0 %v493
          %539 = vmatprep.subr.mxu0 0.0
          %540 = vmatpush1.msra.mxu0 %v492
          %541 = vmatprep.subr.mxu0 0.0
          %542 = vmatpush2.msra.mxu0 0.0
          %543 = vmatprep.subr.mxu0 0.0
          %544 = vmatpush2.msra.mxu0 0.0
          %545 = vmatprep.subr.mxu0 0.0
          %546 = vmatpush2.msra.mxu0 0.0
          %547 = vmatprep.subr.mxu0 0.0
          %548 = vmatpush2.msra.mxu0 0.0
          %549 = vmatprep.subr.mxu0 0.0
          %550 = vmatpush2.msra.mxu0 0.0
          %551 = vmatprep.subr.mxu0 0.0
          %552 = vmatpush2.msra.mxu0 0.0
          %553 = vmatprep.subr.mxu0 0.0
          %554 = vmatpush2.msra.mxu0 0.0
          %555 = vmatprep.subr.mxu0 0.0
          %556 = vmatpush2.msra.mxu0 0.0
          %557 = vmatprep.subr.mxu0 0.0
          %558 = vmatpush2.msra.mxu0 0.0
          %559 = vmatprep.subr.mxu0 0.0
          %560 = vmatpush2.msra.mxu0 0.0
          %561 = vmatprep.subr.mxu0 0.0
          %562 = vmatpush2.msra.mxu0 0.0
          %563 = vmatprep.subr.mxu0 0.0
          %564 = vmatpush2.msra.mxu0 0.0
          %565 = vmatprep.subr.mxu0 0.0
          %566 = vmatpush2.msra.mxu0 0.0
          %567 = vmatprep.subr.mxu0 0.0
          %568 = vmatpush2.msra.mxu0 0.0
          %569 = vmatprep.subr.mxu0 0.0
          %570 = vmatpush2.msra.mxu0 0.0
          %571 = vmatprep.subr.mxu0 0.0
          %572 = vmatpush2.msra.mxu0 0.0
          %573 = vmatprep.mubr.f32.mxu0 0.0
          %574 = vmatmul.mubr.f32.gmra.mxu0 %v491
          %v575 = vpop.f32.mrf.mxu0
          %v576 = vadd.f32 %v508, %v575
          %v577 = vpop.f32.mrf.mxu0
          %578 = vdwg.mxu0
          %579 = vst [vmem:[%s286] sm:$0x1] %v576
        $region60: #{tpu_custom_call.1} parent=39 // pred_fallthru
          _
        %s580 = sand.u32 %s155, 1
        %s581 = scalar_lea.sflag [#allocation5], %s580
        %s582 = sand.u32 %s155, 1
        %s583 = scalar_lea.vmem [#allocation9], %s582
        // Predicated region
        $region61: #{tpu_custom_call.1} parent=39 // pred_check
          %p584 = pneg %p165
        $region62: #{tpu_custom_call.1} parent=39 // pred_check_branch
          %586 = sbr.rel (%p584) target = $region64
        $region63: #{tpu_custom_call.1} parent=39 // pred_region
          %s588 = ssub.s32 16, 16
          %589 = vsyncadd %s581, %s588
          %s590 = smul.addr %s27, 16
          %s591 = scalar_lea.hbm %s5, %s590
          %s593 = sshll.u32 %s583, 4
          %s594 = int_to_ptr.vmem [resolvable:$true] %s593
          %596 = dma.vmem_to_hbm [thread:$0]  %s594, 16, %s591, %s581
        $region64: #{tpu_custom_call.1} parent=39 // pred_fallthru
          _
      $region40: #{tpu_custom_call.1} parent=5 // pred_fallthru
        _
      %p597 = scmp.le.s32.totalorder 2, %s18
      // Predicated region
      $region65: #{tpu_custom_call.1} parent=5 // pred_check
        %p598 = pneg %p597
      $region66: #{tpu_custom_call.1} parent=5 // pred_check_branch
        %600 = sbr.rel (%p598) target = $region68
      $region67: #{tpu_custom_call.1} parent=5 // pred_region
        %s601 = ssub.s32 %s18, 2
        // Predicated region
        $region69: #{tpu_custom_call.1} parent=67 // pred_check
          %p602 = pneg %p171
        $region70: #{tpu_custom_call.1} parent=67 // pred_check_branch
          %604 = sbr.rel (%p602) target = $region72
        $region71: #{tpu_custom_call.1} parent=67 // pred_region
          %s605 = sand.u32 %s156, 1
          %s606 = scalar_lea.sflag [#allocation5], %s605
          %s607 = sand.u32 %s156, 1
          %s608 = scalar_lea.vmem [#allocation9], %s607
          %609 = dma.done %s606, 16
        $region72: #{tpu_custom_call.1} parent=67 // pred_fallthru
          _
      $region68: #{tpu_custom_call.1} parent=5 // pred_fallthru
        _
    $region6: #{tpu_custom_call.1} parent=1 // loop_footer
      %s22 = sadd.s32 1, %s18
    $region7: #{tpu_custom_call.1} parent=1 // loop_footer_branch
      %17 = sbr.rel target = $region3
    $region8: #{tpu_custom_call.1} parent=1 // loop_exit
      _
    %610 = vsyncpa [#allocation4], 1
    %s611 = scalar_lea.sflag [#allocation4], 1
    %612 = vsyncpa %s611, 1
    %613 = vsyncpa [#allocation7], 1
    %614 = vsyncpa [#allocation5], 1
    %s615 = scalar_lea.sflag [#allocation5], 1
    %616 = vsyncpa %s615, 1

</llo_original>
